<compile_context>
chip_gen: v7x
topology: tpu7x:2x2x1
jax: 0.10.0
libtpu: 0.0.40
codegen_flags: <defaults>
</compile_context>

<pallas_src>
import functools

import jax
import jax.numpy as jnp
import numpy as np
from jax.experimental import pallas as pl
from jax.experimental.pallas import tpu as pltpu

LANE = 128     # vreg lane width (last dim)
SUBLANE = 8    # f32 sublane count (second-to-last dim)


def _round_up(n, m):
    return ((n + m - 1) // m) * m


# --------------------------------------------------------------------------- #
# Kernel: one (tb, in_dim) batch tile; weights/biases are grid-resident.
# --------------------------------------------------------------------------- #
def actor_kernel(x_ref, w1_ref, b1_ref, w2_ref, b2_ref, w3_ref, b3_ref, out_ref):
    wdt = w1_ref.dtype  # bf16 (default) or f32 matmul operand dtype

    # x is already streamed in the operand dtype (bf16) -> no cast needed.
    h1 = jnp.dot(x_ref[...], w1_ref[...],
                 preferred_element_type=jnp.float32) + b1_ref[...]
    h1 = jnp.maximum(h1, 0.0)                        # relu in f32 (v5e-safe)

    h2 = jnp.dot(h1.astype(wdt), w2_ref[...],
                 preferred_element_type=jnp.float32) + b2_ref[...]
    h2 = jnp.maximum(h2, 0.0)

    mu = jnp.dot(h2.astype(wdt), w3_ref[...],
                 preferred_element_type=jnp.float32) + b3_ref[...]
    out_ref[...] = jnp.tanh(mu).astype(out_ref.dtype)  # tanh on EUP, f32 -> bf16 store


# --------------------------------------------------------------------------- #
# Parameter prep: lane-pad (128) the *output* dim of every Linear; the input
# dim of W1 is left at in_dim (no lane padding of the streamed activations).
# Zero padding is mathematically inert (relu(0)=0, zero rows contract to 0).
# --------------------------------------------------------------------------- #
def pad_params(params, use_bf16=True):
    wdt = jnp.bfloat16 if use_bf16 else jnp.float32

    def pad_linear(w, b, pad_in):
        w = jnp.asarray(w, jnp.float32)
        b = jnp.asarray(b, jnp.float32).reshape(1, -1)
        fi, fo = w.shape
        pi = _round_up(fi, LANE) if pad_in else fi
        po = _round_up(fo, LANE)
        wp = jnp.zeros((pi, po), jnp.float32).at[:fi, :fo].set(w).astype(wdt)
        bp = jnp.zeros((1, po), jnp.float32).at[:, :fo].set(b)  # bias stays f32
        return wp, bp

    w1, b1 = pad_linear(params["w1"], params["b1"], pad_in=False)
    w2, b2 = pad_linear(params["w2"], params["b2"], pad_in=True)
    w3, b3 = pad_linear(params["w3"], params["b3"], pad_in=True)
    return {"w1": w1, "b1": b1, "w2": w2, "b2": b2, "w3": w3, "b3": b3}


# --------------------------------------------------------------------------- #
# Wrapper
# --------------------------------------------------------------------------- #
@functools.partial(jax.jit, static_argnames=("n_actions", "block_batch"))
def actor_forward(state, padded_params, *, n_actions, block_batch=256):
    """state: (B, input_dim) f32. padded_params: output of pad_params()."""
    p = padded_params
    B, in_dim = state.shape
    assert in_dim == p["w1"].shape[0], "state feature dim must match W1 rows"
    f1p = p["w1"].shape[1]
    f2p = p["w2"].shape[1]
    actp = p["w3"].shape[1]

    # Batch tile: aim for >=4 grid steps (megacore sharding on v7x + DMA/compute
    # pipelining), always a multiple of 8 sublanes, capped at block_batch
    # (default 256 = v6e/v7x MXU M-dim).
    block_batch = max(SUBLANE, _round_up(block_batch, SUBLANE))   # defensive
    tb = max(SUBLANE, min(block_batch, _round_up(pl.cdiv(B, 4), SUBLANE)))
    pb = _round_up(B, tb)
    grid = (pb // tb,)

    # Stream activations in bf16; pad ONLY the batch axis (lane width stays
    # in_dim — no 8->128 lane pad materialized in HBM).
    x = state.astype(jnp.bfloat16)
    if pb != B:
        x = jnp.pad(x, ((0, pb - B), (0, 0)))

    resident = lambda i: (0, 0)   # weights/biases: DMA'd once, VMEM-resident

    flops = 2 * pb * (in_dim * f1p + f1p * f2p + f2p * actp)
    bytes_accessed = int(
        pb * in_dim * 2 + pb * actp * 2          # bf16 activations in / out
        + sum(int(np.prod(p[k].shape)) * p[k].dtype.itemsize
              for k in ("w1", "b1", "w2", "b2", "w3", "b3")))

    out = pl.pallas_call(
        actor_kernel,
        out_shape=jax.ShapeDtypeStruct((pb, actp), jnp.bfloat16),
        grid=grid,
        in_specs=[
            pl.BlockSpec((tb, in_dim), lambda i: (i, 0)),   # streamed activations
            pl.BlockSpec(p["w1"].shape, resident),
            pl.BlockSpec(p["b1"].shape, resident),
            pl.BlockSpec(p["w2"].shape, resident),
            pl.BlockSpec(p["b2"].shape, resident),
            pl.BlockSpec(p["w3"].shape, resident),
            pl.BlockSpec(p["b3"].shape, resident),
        ],
        # Keep the output lane-dense at 128 (unmasked vst); slice in the wrapper.
        out_specs=pl.BlockSpec((tb, actp), lambda i: (i, 0)),
        compiler_params=pltpu.CompilerParams(
            # Batch tiles are independent -> shard across both TCs on v7x.
            dimension_semantics=("parallel",),
            # VMEM use: 2 x (tb*in_dim + tb*128)*2B activation buffers + ~70 KB
            # of weights — far below every generation's limit (incl. v7x 64 MiB),
            # so no vmem_limit_bytes override.
        ),
        cost_estimate=pl.CostEstimate(
            flops=flops, transcendentals=pb * actp, bytes_accessed=bytes_accessed),
    )(x, p["w1"], p["b1"], p["w2"], p["b2"], p["w3"], p["b3"])

    # Slice out the real batch/actions and restore f32 for RL consumers.
    return out[:B, :n_actions].astype(jnp.float32)


# --------------------------------------------------------------------------- #
# Init (mimics nn.Linear default U(-1/sqrt(fan_in), 1/sqrt(fan_in)); weights
# stored as (in, out) = PyTorch weight.T).
# --------------------------------------------------------------------------- #
def init_actor_params(key, input_dim, fc1_dims, fc2_dims, n_actions):
    keys = jax.random.split(key, 6)

    def linear(kw, kb, fan_in, fan_out):
        bound = 1.0 / np.sqrt(fan_in)
        w = jax.random.uniform(kw, (fan_in, fan_out), jnp.float32, -bound, bound)
        b = jax.random.uniform(kb, (1, fan_out), jnp.float32, -bound, bound)
        return w, b

    w1, b1 = linear(keys[0], keys[1], input_dim, fc1_dims)
    w2, b2 = linear(keys[2], keys[3], fc1_dims, fc2_dims)
    w3, b3 = linear(keys[4], keys[5], fc2_dims, n_actions)
    return {"w1": w1, "b1": b1, "w2": w2, "b2": b2, "w3": w3, "b3": b3}


# TODO(synk): checkpoint save/load and the Adam optimizer from the PyTorch module
# are training/IO utilities with no kernel equivalent; only forward() is implemented.


def _ref_forward_np(x, params):
    """Exact f32 reference of the PyTorch forward (numpy, CPU)."""
    w1, b1 = np.asarray(params["w1"]), np.asarray(params["b1"])
    w2, b2 = np.asarray(params["w2"]), np.asarray(params["b2"])
    w3, b3 = np.asarray(params["w3"]), np.asarray(params["b3"])
    h = np.maximum(np.asarray(x) @ w1 + b1, 0.0)
    h = np.maximum(h @ w2 + b2, 0.0)
    return np.tanh(h @ w3 + b3)


if __name__ == "__main__":
    # Small shapes consistent with the module:
    # input_dims=(8,), fc1_dims=32, fc2_dims=32, n_actions=4, batch=2
    key = jax.random.PRNGKey(0)
    k_params, k_state, k_state2 = jax.random.split(key, 3)

    B, input_dim, fc1_dims, fc2_dims, n_actions = 2, 8, 32, 32, 4
    params = init_actor_params(k_params, input_dim, fc1_dims, fc2_dims, n_actions)
    padded = pad_params(params, use_bf16=True)

    # --- main run at the module's small shapes ---
    state = jax.random.normal(k_state, (B, input_dim), jnp.float32)
    mu = jax.block_until_ready(actor_forward(state, padded, n_actions=n_actions))
    assert mu.shape == (B, n_actions) and mu.dtype == jnp.float32
    np.testing.assert_allclose(np.asarray(mu), _ref_forward_np(state, params),
                               rtol=4e-2, atol=4e-2)   # bf16 operand/IO tolerance

    # --- exercise the multi-tile batch grid (replay-buffer sized batch) ---
    state_big = jax.random.normal(k_state2, (256, input_dim), jnp.float32)
    mu_big = jax.block_until_ready(
        actor_forward(state_big, padded, n_actions=n_actions, block_batch=128))
    assert mu_big.shape == (256, n_actions)
    np.testing.assert_allclose(np.asarray(mu_big), _ref_forward_np(state_big, params),
                               rtol=4e-2, atol=4e-2)

    print("KERNEL_OK")
</pallas_src>

<mosaic_0001>
module attributes {stable_mosaic.version = 11 : i64} {
  func.func @actor_kernel(%arg0: i32, %arg1: memref<8x8xbf16, #tpu.memory_space<vmem>>, %arg2: memref<8x128xbf16, #tpu.memory_space<vmem>>, %arg3: memref<1x128xf32, #tpu.memory_space<vmem>>, %arg4: memref<128x128xbf16, #tpu.memory_space<vmem>>, %arg5: memref<1x128xf32, #tpu.memory_space<vmem>>, %arg6: memref<128x128xbf16, #tpu.memory_space<vmem>>, %arg7: memref<1x128xf32, #tpu.memory_space<vmem>>, %arg8: memref<8x128xbf16, #tpu.memory_space<vmem>>) attributes {dimension_semantics = [#tpu.dimension_semantics<parallel>], iteration_bounds = array<i64: 1>, scalar_prefetch = 0 : i64, scratch_operands = 0 : i64, tpu.core_type = #tpu.core_type<tc>, window_params = [{transform_indices = @transform_0, window_bounds = array<i64: 8, 8>}, {pipeline_mode = #tpu.pipeline_mode<synchronous>, transform_indices = @transform_1, window_bounds = array<i64: 8, 128>}, {pipeline_mode = #tpu.pipeline_mode<synchronous>, transform_indices = @transform_2, window_bounds = array<i64: 1, 128>}, {pipeline_mode = #tpu.pipeline_mode<synchronous>, transform_indices = @transform_3, window_bounds = array<i64: 128, 128>}, {pipeline_mode = #tpu.pipeline_mode<synchronous>, transform_indices = @transform_4, window_bounds = array<i64: 1, 128>}, {pipeline_mode = #tpu.pipeline_mode<synchronous>, transform_indices = @transform_5, window_bounds = array<i64: 128, 128>}, {pipeline_mode = #tpu.pipeline_mode<synchronous>, transform_indices = @transform_6, window_bounds = array<i64: 1, 128>}, {transform_indices = @transform_7, window_bounds = array<i64: 8, 128>}]} {
    %c0 = arith.constant 0 : index
    %c0_0 = arith.constant 0 : index
    %0 = vector.load %arg1[%c0, %c0_0] : memref<8x8xbf16, #tpu.memory_space<vmem>>, vector<8x8xbf16>
    %c0_1 = arith.constant 0 : index
    %c0_2 = arith.constant 0 : index
    %1 = vector.load %arg2[%c0_1, %c0_2] : memref<8x128xbf16, #tpu.memory_space<vmem>>, vector<8x128xbf16>
    %cst = arith.constant dense<0.000000e+00> : vector<8x128xf32>
    %2 = tpu.matmul %0, %1, %cst {dimension_numbers = #tpu.dot_dimension_numbers<[1], [0], [0], [1], [0, 0, 1, 1], [], []>} : vector<8x8xbf16>, vector<8x128xbf16>, vector<8x128xf32> -> vector<8x128xf32>
    %c0_3 = arith.constant 0 : index
    %c0_4 = arith.constant 0 : index
    %3 = vector.load %arg3[%c0_3, %c0_4] : memref<1x128xf32, #tpu.memory_space<vmem>>, vector<1x128xf32>
    %4 = vector.broadcast %3 : vector<1x128xf32> to vector<8x128xf32>
    %5 = arith.addf %2, %4 : vector<8x128xf32>
    %cst_5 = arith.constant 0.000000e+00 : f32
    %6 = vector.broadcast %cst_5 : f32 to vector<8x128xf32>
    %7 = arith.maximumf %5, %6 : vector<8x128xf32>
    %8 = arith.truncf %7 : vector<8x128xf32> to vector<8x128xbf16>
    %c0_6 = arith.constant 0 : index
    %c0_7 = arith.constant 0 : index
    %9 = vector.load %arg4[%c0_6, %c0_7] : memref<128x128xbf16, #tpu.memory_space<vmem>>, vector<128x128xbf16>
    %cst_8 = arith.constant dense<0.000000e+00> : vector<8x128xf32>
    %10 = tpu.matmul %8, %9, %cst_8 {dimension_numbers = #tpu.dot_dimension_numbers<[1], [0], [0], [1], [0, 0, 1, 1], [], []>} : vector<8x128xbf16>, vector<128x128xbf16>, vector<8x128xf32> -> vector<8x128xf32>
    %c0_9 = arith.constant 0 : index
    %c0_10 = arith.constant 0 : index
    %11 = vector.load %arg5[%c0_9, %c0_10] : memref<1x128xf32, #tpu.memory_space<vmem>>, vector<1x128xf32>
    %12 = vector.broadcast %11 : vector<1x128xf32> to vector<8x128xf32>
    %13 = arith.addf %10, %12 : vector<8x128xf32>
    %cst_11 = arith.constant 0.000000e+00 : f32
    %14 = vector.broadcast %cst_11 : f32 to vector<8x128xf32>
    %15 = arith.maximumf %13, %14 : vector<8x128xf32>
    %16 = arith.truncf %15 : vector<8x128xf32> to vector<8x128xbf16>
    %c0_12 = arith.constant 0 : index
    %c0_13 = arith.constant 0 : index
    %17 = vector.load %arg6[%c0_12, %c0_13] : memref<128x128xbf16, #tpu.memory_space<vmem>>, vector<128x128xbf16>
    %cst_14 = arith.constant dense<0.000000e+00> : vector<8x128xf32>
    %18 = tpu.matmul %16, %17, %cst_14 {dimension_numbers = #tpu.dot_dimension_numbers<[1], [0], [0], [1], [0, 0, 1, 1], [], []>} : vector<8x128xbf16>, vector<128x128xbf16>, vector<8x128xf32> -> vector<8x128xf32>
    %c0_15 = arith.constant 0 : index
    %c0_16 = arith.constant 0 : index
    %19 = vector.load %arg7[%c0_15, %c0_16] : memref<1x128xf32, #tpu.memory_space<vmem>>, vector<1x128xf32>
    %20 = vector.broadcast %19 : vector<1x128xf32> to vector<8x128xf32>
    %21 = arith.addf %18, %20 : vector<8x128xf32>
    %22 = math.tanh %21 : vector<8x128xf32>
    %23 = arith.truncf %22 : vector<8x128xf32> to vector<8x128xbf16>
    %c0_17 = arith.constant 0 : index
    %c0_18 = arith.constant 0 : index
    %24 = vector.load %arg8[%c0_17, %c0_18] : memref<8x128xbf16, #tpu.memory_space<vmem>>, vector<8x128xbf16>
    tpu.vector_store %arg8[%c0_17, %c0_18], %23 {strides = array<i32>} : memref<8x128xbf16, #tpu.memory_space<vmem>>, vector<8x128xbf16>,
    return
  }
  func.func @transform_0(%arg0: i32) -> (i32, i32) {
    %c0_i32 = arith.constant 0 : i32
    %c0_i32_0 = arith.constant 0 : i32
    return %arg0, %c0_i32 : i32, i32
  }
  func.func @transform_1(%arg0: i32) -> (i32, i32) {
    %c0_i32 = arith.constant 0 : i32
    %c0_i32_0 = arith.constant 0 : i32
    %c0_i32_1 = arith.constant 0 : i32
    return %c0_i32, %c0_i32_0 : i32, i32
  }
  func.func @transform_2(%arg0: i32) -> (i32, i32) {
    %c0_i32 = arith.constant 0 : i32
    %c0_i32_0 = arith.constant 0 : i32
    %c0_i32_1 = arith.constant 0 : i32
    return %c0_i32, %c0_i32_0 : i32, i32
  }
  func.func @transform_3(%arg0: i32) -> (i32, i32) {
    %c0_i32 = arith.constant 0 : i32
    %c0_i32_0 = arith.constant 0 : i32
    %c0_i32_1 = arith.constant 0 : i32
    return %c0_i32, %c0_i32_0 : i32, i32
  }
  func.func @transform_4(%arg0: i32) -> (i32, i32) {
    %c0_i32 = arith.constant 0 : i32
    %c0_i32_0 = arith.constant 0 : i32
    %c0_i32_1 = arith.constant 0 : i32
    return %c0_i32, %c0_i32_0 : i32, i32
  }
  func.func @transform_5(%arg0: i32) -> (i32, i32) {
    %c0_i32 = arith.constant 0 : i32
    %c0_i32_0 = arith.constant 0 : i32
    %c0_i32_1 = arith.constant 0 : i32
    return %c0_i32, %c0_i32_0 : i32, i32
  }
  func.func @transform_6(%arg0: i32) -> (i32, i32) {
    %c0_i32 = arith.constant 0 : i32
    %c0_i32_0 = arith.constant 0 : i32
    %c0_i32_1 = arith.constant 0 : i32
    return %c0_i32, %c0_i32_0 : i32, i32
  }
  func.func @transform_7(%arg0: i32) -> (i32, i32) {
    %c0_i32 = arith.constant 0 : i32
    %c0_i32_0 = arith.constant 0 : i32
    return %arg0, %c0_i32 : i32, i32
  }
}

</mosaic_0001>

<llo_original>
// kernel: actor_forward.1
$region0: #{actor_forward.1}
  #allocation0 [shape = 'u32[]', space=smem, size = 0x4, offset = 0x4, fixed_abs, tag = 'smem constant byte address 0x4 - core index']
  #allocation1 [shape = 'u32[144,128]{1,0:T(1,128)}', space=vmem, size = 0x12000, scoped, tag = 'internal scratch']
  %s0 = inlined_call_operand.vmem [shape: bf16[8,8], index: 0, kind: input, shape index: {}]
  %s1 = inlined_call_operand.vmem [shape: bf16[8,128], index: 1, kind: input, shape index: {}]
  %s2 = inlined_call_operand.vmem [shape: f32[1,128], index: 2, kind: input, shape index: {}]
  %s3 = inlined_call_operand.hbm [shape: bf16[128,128], index: 3, kind: input, shape index: {}]
  %s4 = inlined_call_operand.vmem [shape: f32[1,128], index: 4, kind: input, shape index: {}]
  %s5 = inlined_call_operand.hbm [shape: bf16[128,128], index: 5, kind: input, shape index: {}]
  %s6 = inlined_call_operand.vmem [shape: f32[1,128], index: 6, kind: input, shape index: {}]
  %s7 = inlined_call_operand.vmem [shape: bf16[8,128], index: 7, kind: output, shape index: {}]
  %s8 = sld [smem:[#allocation0]]
  $region46: #{actor_forward.1} parent=0
    _
  %s10 = ssub.s32 1, %s8
  %s11 = scalar_select 0, %s10, %s8
  $region1: #{actor_forward.1} parent=0
    #allocation2 [shape = 'u8[32768]{0}', space=vmem, size = 0x8000, scoped, tag = 'input window, operand 3, single buffered']
    #allocation3 [shape = 's32[1]{0}', space=sflag, size = 0x4, scoped, tag = 'scoped memory for actor_forward.1']
    #allocation4 [shape = 'u8[32768]{0}', space=vmem, size = 0x8000, scoped, tag = 'input window, operand 5, single buffered']
    #allocation5 [shape = 's32[1]{0}', space=sflag, size = 0x4, scoped, tag = 'scoped memory for actor_forward.1']
    %12 = vsyncpa [#allocation3], 0
    %13 = vsyncpa [#allocation5], 0
    // Predicated region
    $region2: #{actor_forward.1} parent=1 // pred_check
      _
    $region3: #{actor_forward.1} parent=1 // pred_check_branch
      %15 = sbr.rel (0) target = $region5
    $region4: #{actor_forward.1} parent=1 // pred_region
      _
    $region5: #{actor_forward.1} parent=1 // pred_fallthru
      _
    // Predicated region
    $region6: #{actor_forward.1} parent=1 // pred_check
      _
    $region7: #{actor_forward.1} parent=1 // pred_check_branch
      %17 = sbr.rel (0) target = $region9
    $region8: #{actor_forward.1} parent=1 // pred_region
      _
    $region9: #{actor_forward.1} parent=1 // pred_fallthru
      _
    // Predicated region
    $region10: #{actor_forward.1} parent=1 // pred_check
      _
    $region11: #{actor_forward.1} parent=1 // pred_check_branch
      %19 = sbr.rel (0) target = $region13
    $region12: #{actor_forward.1} parent=1 // pred_region
      _
    $region13: #{actor_forward.1} parent=1 // pred_fallthru
      _
    // Predicated region
    $region14: #{actor_forward.1} parent=1 // pred_check
      _
    $region15: #{actor_forward.1} parent=1 // pred_check_branch
      %21 = sbr.rel (0) target = $region17
    $region16: #{actor_forward.1} parent=1 // pred_region
      %s23 = ssub.s32 1024, 1024
      %24 = vsyncadd [#allocation3], %s23
      %s25 = sshll.u32 [#allocation2], 4
      %s26 = int_to_ptr.vmem [resolvable:$true] %s25
      %31 = dma.hbm_to_vmem [thread:$0]  %s3, 1024, %s26, [#allocation3], 64, 64, 4
    $region17: #{actor_forward.1} parent=1 // pred_fallthru
      _
    // Predicated region
    $region18: #{actor_forward.1} parent=1 // pred_check
      _
    $region19: #{actor_forward.1} parent=1 // pred_check_branch
      %33 = sbr.rel (0) target = $region21
    $region20: #{actor_forward.1} parent=1 // pred_region
      _
    $region21: #{actor_forward.1} parent=1 // pred_fallthru
      _
    // Predicated region
    $region22: #{actor_forward.1} parent=1 // pred_check
      _
    $region23: #{actor_forward.1} parent=1 // pred_check_branch
      %35 = sbr.rel (0) target = $region25
    $region24: #{actor_forward.1} parent=1 // pred_region
      %s37 = ssub.s32 1024, 1024
      %38 = vsyncadd [#allocation5], %s37
      %s39 = sshll.u32 [#allocation4], 4
      %s40 = int_to_ptr.vmem [resolvable:$true] %s39
      %45 = dma.hbm_to_vmem [thread:$0]  %s5, 1024, %s40, [#allocation5], 64, 64, 4
    $region25: #{actor_forward.1} parent=1 // pred_fallthru
      _
    // Predicated region
    $region26: #{actor_forward.1} parent=1 // pred_check
      _
    $region27: #{actor_forward.1} parent=1 // pred_check_branch
      %47 = sbr.rel (0) target = $region29
    $region28: #{actor_forward.1} parent=1 // pred_region
      _
    $region29: #{actor_forward.1} parent=1 // pred_fallthru
      _
    // Predicated region
    $region30: #{actor_forward.1} parent=1 // pred_check
      _
    $region31: #{actor_forward.1} parent=1 // pred_check_branch
      %49 = sbr.rel (0) target = $region33
    $region32: #{actor_forward.1} parent=1 // pred_region
      %50 = dma.done [#allocation3], 1024
    $region33: #{actor_forward.1} parent=1 // pred_fallthru
      _
    // Predicated region
    $region34: #{actor_forward.1} parent=1 // pred_check
      _
    $region35: #{actor_forward.1} parent=1 // pred_check_branch
      %52 = sbr.rel (0) target = $region37
    $region36: #{actor_forward.1} parent=1 // pred_region
      %53 = dma.done [#allocation5], 1024
    $region37: #{actor_forward.1} parent=1 // pred_fallthru
      _
    %v55 = vld [vmem:[%s0] sm:$0xf]
    %v56 = vld [vmem:[%s1] sm:$0xf]
    %v57 = vld [vmem:[%s2] sm:$0x1]
    %v59 = vlaneseq
    %v60 = vshrl.u32 %v59, 7
    %v61 = vsub.s32 0, %v60
    %v62 = vrot.slane %v57, %v61
    %vm64 = vcmask 64512
    %v66 = vsel %vm64, %v55, 0
    %vm68 = vcmask 1043456
    %v70 = vsel %vm68, %v56, 0
    %72 = vmatprep.subr.bf16.mxu0 0
    %73 = vmatpush1.bf16.msra.mxu0 %v70
    %74 = vmatprep.subr.bf16.mxu0 0
    %75 = vmatpush1.bf16.msra.mxu0 0
    %76 = vmatprep.subr.bf16.mxu0 0
    %77 = vmatpush1.bf16.msra.mxu0 0
    %78 = vmatprep.subr.bf16.mxu0 0
    %79 = vmatpush1.bf16.msra.mxu0 0
    %80 = vmatprep.subr.bf16.mxu0 0
    %81 = vmatpush1.bf16.msra.mxu0 0
    %82 = vmatprep.subr.bf16.mxu0 0
    %83 = vmatpush1.bf16.msra.mxu0 0
    %84 = vmatprep.subr.bf16.mxu0 0
    %85 = vmatpush1.bf16.msra.mxu0 0
    %86 = vmatprep.subr.bf16.mxu0 0
    %87 = vmatpush1.bf16.msra.mxu0 0
    %88 = vmatprep.subr.bf16.mxu0 0
    %89 = vmatpush1.bf16.msra.mxu0 0
    %90 = vmatprep.subr.bf16.mxu0 0
    %91 = vmatpush1.bf16.msra.mxu0 0
    %92 = vmatprep.subr.bf16.mxu0 0
    %93 = vmatpush1.bf16.msra.mxu0 0
    %94 = vmatprep.subr.bf16.mxu0 0
    %95 = vmatpush1.bf16.msra.mxu0 0
    %96 = vmatprep.subr.bf16.mxu0 0
    %97 = vmatpush1.bf16.msra.mxu0 0
    %98 = vmatprep.subr.bf16.mxu0 0
    %99 = vmatpush1.bf16.msra.mxu0 0
    %100 = vmatprep.subr.bf16.mxu0 0
    %101 = vmatpush1.bf16.msra.mxu0 0
    %102 = vmatprep.subr.bf16.mxu0 0
    %103 = vmatpush1.bf16.msra.mxu0 0
    %104 = vmatprep.mubr.bf16.mxu0 0
    %105 = vmatmul.mubr.bf16.gmra.mrb[0].mxu0 %v66
    %v106 = vpop.f32.mrb[0].mxu0
    %v107 = vadd.f32 %v62, %v106
    %v108 = vpop.f32.mrb[0].mxu0
    %v109 = vpop.f32.mrb[0].mxu0
    %v110 = vpop.f32.mrb[0].mxu0
    %111 = vdwg.mxu0
    %v112 = vmax.f32 %v107, 0.0
    %v113 = vpack.c.bf16 %v112, %v112
    %v114 = vld [vmem:[#allocation2] sm:$0xf]
    %v115 = vld [vmem:[#allocation2 + $0x4] sm:$0xf]
    %v116 = vld [vmem:[#allocation2 + $0x8] sm:$0xf]
    %v117 = vld [vmem:[#allocation2 + $0xc] sm:$0xf]
    %v118 = vld [vmem:[#allocation2 + $0x10] sm:$0xf]
    %v119 = vld [vmem:[#allocation2 + $0x14] sm:$0xf]
    %v120 = vld [vmem:[#allocation2 + $0x18] sm:$0xf]
    %v121 = vld [vmem:[#allocation2 + $0x1c] sm:$0xf]
    %v122 = vld [vmem:[#allocation2 + $0x20] sm:$0xf]
    %v123 = vld [vmem:[#allocation2 + $0x24] sm:$0xf]
    %v124 = vld [vmem:[#allocation2 + $0x28] sm:$0xf]
    %v125 = vld [vmem:[#allocation2 + $0x2c] sm:$0xf]
    %v126 = vld [vmem:[#allocation2 + $0x30] sm:$0xf]
    %v127 = vld [vmem:[#allocation2 + $0x34] sm:$0xf]
    %v128 = vld [vmem:[#allocation2 + $0x38] sm:$0xf]
    %v129 = vld [vmem:[#allocation2 + $0x3c] sm:$0xf]
    %v130 = vld [vmem:[%s4] sm:$0x1]
    %v132 = vlaneseq
    %v133 = vshrl.u32 %v132, 7
    %v134 = vsub.s32 0, %v133
    %v135 = vrot.slane %v130, %v134
    %v153 = vunpack.c.l.b16 %v114
    %v154 = vunpack.c.l.b16 %v115
    %v155 = vunpack.c.l.b16 %v116
    %v156 = vunpack.c.l.b16 %v117
    %v157 = vunpack.c.l.b16 %v118
    %v158 = vunpack.c.l.b16 %v119
    %v159 = vunpack.c.l.b16 %v120
    %v160 = vunpack.c.l.b16 %v121
    %v161 = vunpack.c.l.b16 %v122
    %v162 = vunpack.c.l.b16 %v123
    %v163 = vunpack.c.l.b16 %v124
    %v164 = vunpack.c.l.b16 %v125
    %v165 = vunpack.c.l.b16 %v126
    %v166 = vunpack.c.l.b16 %v127
    %v167 = vunpack.c.l.b16 %v128
    %v168 = vunpack.c.l.b16 %v129
    %v169 = vpack.c.b16 %v154, %v153
    %v170 = vpack.c.b16 %v156, %v155
    %v171 = vpack.c.b16 %v158, %v157
    %v172 = vpack.c.b16 %v160, %v159
    %v173 = vpack.c.b16 %v162, %v161
    %v174 = vpack.c.b16 %v164, %v163
    %v175 = vpack.c.b16 %v166, %v165
    %v176 = vpack.c.b16 %v168, %v167
    %185 = vmatprep.subr.bf16.mxu0 0
    %186 = vmatpush1.bf16.msra.mxu0 %v169
    %187 = vmatprep.subr.bf16.mxu0 0
    %188 = vmatpush1.bf16.msra.mxu0 %v170
    %189 = vmatprep.subr.bf16.mxu0 0
    %190 = vmatpush1.bf16.msra.mxu0 %v171
    %191 = vmatprep.subr.bf16.mxu0 0
    %192 = vmatpush1.bf16.msra.mxu0 %v172
    %193 = vmatprep.subr.bf16.mxu0 0
    %194 = vmatpush1.bf16.msra.mxu0 %v173
    %195 = vmatprep.subr.bf16.mxu0 0
    %196 = vmatpush1.bf16.msra.mxu0 %v174
    %197 = vmatprep.subr.bf16.mxu0 0
    %198 = vmatpush1.bf16.msra.mxu0 %v175
    %199 = vmatprep.subr.bf16.mxu0 0
    %200 = vmatpush1.bf16.msra.mxu0 %v176
    %201 = vmatprep.subr.bf16.mxu0 0
    %202 = vmatpush1.bf16.msra.mxu0 0
    %203 = vmatprep.subr.bf16.mxu0 0
    %204 = vmatpush1.bf16.msra.mxu0 0
    %205 = vmatprep.subr.bf16.mxu0 0
    %206 = vmatpush1.bf16.msra.mxu0 0
    %207 = vmatprep.subr.bf16.mxu0 0
    %208 = vmatpush1.bf16.msra.mxu0 0
    %209 = vmatprep.subr.bf16.mxu0 0
    %210 = vmatpush1.bf16.msra.mxu0 0
    %211 = vmatprep.subr.bf16.mxu0 0
    %212 = vmatpush1.bf16.msra.mxu0 0
    %213 = vmatprep.subr.bf16.mxu0 0
    %214 = vmatpush1.bf16.msra.mxu0 0
    %215 = vmatprep.subr.bf16.mxu0 0
    %216 = vmatpush1.bf16.msra.mxu0 0
    %217 = vmatprep.mubr.bf16.mxu0 0
    %218 = vmatmul.mubr.bf16.gmra.mrb[0].mxu0 %v113
    %v219 = vpop.f32.mrb[0].mxu0
    %v220 = vadd.f32 %v135, %v219
    %v221 = vpop.f32.mrb[0].mxu0
    %v222 = vpop.f32.mrb[0].mxu0
    %v223 = vpop.f32.mrb[0].mxu0
    %224 = vdwg.mxu0
    %v225 = vmax.f32 %v220, 0.0
    %v226 = vpack.c.bf16 %v225, %v225
    %v227 = vld [vmem:[#allocation4] sm:$0xf]
    %v228 = vld [vmem:[#allocation4 + $0x4] sm:$0xf]
    %v229 = vld [vmem:[#allocation4 + $0x8] sm:$0xf]
    %v230 = vld [vmem:[#allocation4 + $0xc] sm:$0xf]
    %v231 = vld [vmem:[#allocation4 + $0x10] sm:$0xf]
    %v232 = vld [vmem:[#allocation4 + $0x14] sm:$0xf]
    %v233 = vld [vmem:[#allocation4 + $0x18] sm:$0xf]
    %v234 = vld [vmem:[#allocation4 + $0x1c] sm:$0xf]
    %v235 = vld [vmem:[#allocation4 + $0x20] sm:$0xf]
    %v236 = vld [vmem:[#allocation4 + $0x24] sm:$0xf]
    %v237 = vld [vmem:[#allocation4 + $0x28] sm:$0xf]
    %v238 = vld [vmem:[#allocation4 + $0x2c] sm:$0xf]
    %v239 = vld [vmem:[#allocation4 + $0x30] sm:$0xf]
    %v240 = vld [vmem:[#allocation4 + $0x34] sm:$0xf]
    %v241 = vld [vmem:[#allocation4 + $0x38] sm:$0xf]
    %v242 = vld [vmem:[#allocation4 + $0x3c] sm:$0xf]
    %v243 = vld [vmem:[%s6] sm:$0x1]
    %v245 = vlaneseq
    %v246 = vshrl.u32 %v245, 7
    %v247 = vsub.s32 0, %v246
    %v248 = vrot.slane %v243, %v247
    %v266 = vunpack.c.l.b16 %v227
    %v267 = vunpack.c.l.b16 %v228
    %v268 = vunpack.c.l.b16 %v229
    %v269 = vunpack.c.l.b16 %v230
    %v270 = vunpack.c.l.b16 %v231
    %v271 = vunpack.c.l.b16 %v232
    %v272 = vunpack.c.l.b16 %v233
    %v273 = vunpack.c.l.b16 %v234
    %v274 = vunpack.c.l.b16 %v235
    %v275 = vunpack.c.l.b16 %v236
    %v276 = vunpack.c.l.b16 %v237
    %v277 = vunpack.c.l.b16 %v238
    %v278 = vunpack.c.l.b16 %v239
    %v279 = vunpack.c.l.b16 %v240
    %v280 = vunpack.c.l.b16 %v241
    %v281 = vunpack.c.l.b16 %v242
    %v282 = vpack.c.b16 %v267, %v266
    %v283 = vpack.c.b16 %v269, %v268
    %v284 = vpack.c.b16 %v271, %v270
    %v285 = vpack.c.b16 %v273, %v272
    %v286 = vpack.c.b16 %v275, %v274
    %v287 = vpack.c.b16 %v277, %v276
    %v288 = vpack.c.b16 %v279, %v278
    %v289 = vpack.c.b16 %v281, %v280
    %298 = vmatprep.subr.bf16.mxu0 0
    %299 = vmatpush1.bf16.msra.mxu0 %v282
    %300 = vmatprep.subr.bf16.mxu0 0
    %301 = vmatpush1.bf16.msra.mxu0 %v283
    %302 = vmatprep.subr.bf16.mxu0 0
    %303 = vmatpush1.bf16.msra.mxu0 %v284
    %304 = vmatprep.subr.bf16.mxu0 0
    %305 = vmatpush1.bf16.msra.mxu0 %v285
    %306 = vmatprep.subr.bf16.mxu0 0
    %307 = vmatpush1.bf16.msra.mxu0 %v286
    %308 = vmatprep.subr.bf16.mxu0 0
    %309 = vmatpush1.bf16.msra.mxu0 %v287
    %310 = vmatprep.subr.bf16.mxu0 0
    %311 = vmatpush1.bf16.msra.mxu0 %v288
    %312 = vmatprep.subr.bf16.mxu0 0
    %313 = vmatpush1.bf16.msra.mxu0 %v289
    %314 = vmatprep.subr.bf16.mxu0 0
    %315 = vmatpush1.bf16.msra.mxu0 0
    %316 = vmatprep.subr.bf16.mxu0 0
    %317 = vmatpush1.bf16.msra.mxu0 0
    %318 = vmatprep.subr.bf16.mxu0 0
    %319 = vmatpush1.bf16.msra.mxu0 0
    %320 = vmatprep.subr.bf16.mxu0 0
    %321 = vmatpush1.bf16.msra.mxu0 0
    %322 = vmatprep.subr.bf16.mxu0 0
    %323 = vmatpush1.bf16.msra.mxu0 0
    %324 = vmatprep.subr.bf16.mxu0 0
    %325 = vmatpush1.bf16.msra.mxu0 0
    %326 = vmatprep.subr.bf16.mxu0 0
    %327 = vmatpush1.bf16.msra.mxu0 0
    %328 = vmatprep.subr.bf16.mxu0 0
    %329 = vmatpush1.bf16.msra.mxu0 0
    %330 = vmatprep.mubr.bf16.mxu0 0
    %331 = vmatmul.mubr.bf16.gmra.mrb[0].mxu0 %v226
    %v332 = vpop.f32.mrb[0].mxu0
    %v333 = vadd.f32 %v248, %v332
    %v334 = vpop.f32.mrb[0].mxu0
    %v335 = vpop.f32.mrb[0].mxu0
    %v336 = vpop.f32.mrb[0].mxu0
    %337 = vdwg.mxu0
    %v338 = vtanh.pop %v333
    %v339 = vpack.c.bf16 %v338, %v338
    %340 = vst [vmem:[%s7] sm:$0xf] %v339
    // Predicated region
    $region38: #{actor_forward.1} parent=1 // pred_check
      _
    $region39: #{actor_forward.1} parent=1 // pred_check_branch
      %342 = sbr.rel (0) target = $region41
    $region40: #{actor_forward.1} parent=1 // pred_region
      _
    $region41: #{actor_forward.1} parent=1 // pred_fallthru
      _
    // Predicated region
    $region42: #{actor_forward.1} parent=1 // pred_check
      _
    $region43: #{actor_forward.1} parent=1 // pred_check_branch
      %344 = sbr.rel (0) target = $region45
    $region44: #{actor_forward.1} parent=1 // pred_region
      _
    $region45: #{actor_forward.1} parent=1 // pred_fallthru
      _
    %345 = vsyncpa [#allocation3], 1
    %346 = vsyncpa [#allocation5], 1

</llo_original>
